<compile_context>
chip_gen: v6e
topology: v6e:2x2x1
jax: 0.10.0
libtpu: 0.0.40
codegen_flags: <defaults>
</compile_context>

<pallas_src>
import math
import numpy as np
import jax
import jax.numpy as jnp
from jax.experimental import pallas as pl
from jax.experimental.pallas import tpu as pltpu

T_DEFAULT = 300
LOW_BOUND = 40
HIGH_BOUND = 180
F = HIGH_BOUND - LOW_BOUND           # 140
F_PAD = 256                          # next multiple of 128 >= 140 (lane-dense)
SEED = 8                             # exact-trig seed rows per index set


def _pick_time_tiling(T):
    """(J, C), both multiples of 8, J*C >= T, minimizing J + C (then J)."""
    best = None
    c_max = ((T + 7) // 8) * 8
    for C in range(8, c_max + 1, 8):
        J = ((-(-T // C)) + 7) // 8 * 8
        key = (J + C, J)
        if best is None or key < best[0]:
            best = (key, J, C)
    return best[1], best[2]


def _derive_tables(seed_sin, seed_cos, n_blocks):
    """Extend exact sin/cos of the first 8 terms of an arithmetic angle
    progression {0, d, 2d, ...}*theta to 8*n_blocks terms via angle addition.

    seed_sin/seed_cos: (8, F) exact sin/cos of {0, d, ..., 7d}*theta.
    Block k (k >= 1) equals block 0 shifted by 8*k*d*theta; the shift's
    sin/cos is seeded by a double-angle on row 4 (angle 4*d*theta) and then
    chained with exact angle-addition.  Only cheap VALU ops per derived vreg.
    """
    sins, coss = [seed_sin], [seed_cos]
    if n_blocks > 1:
        s4 = seed_sin[4:5, :]
        c4 = seed_cos[4:5, :]
        s_step = 2.0 * s4 * c4               # sin(8*d*theta)
        c_step = 1.0 - 2.0 * s4 * s4         # cos(8*d*theta)
        s_shift, c_shift = s_step, c_step
        for k in range(1, n_blocks):
            sins.append(seed_sin * c_shift + seed_cos * s_shift)
            coss.append(seed_cos * c_shift - seed_sin * s_shift)
            if k + 1 < n_blocks:
                s_shift, c_shift = (s_shift * c_step + c_shift * s_step,
                                    c_shift * c_step - s_shift * s_step)
    if n_blocks == 1:
        return sins[0], coss[0]
    return jnp.concatenate(sins, axis=0), jnp.concatenate(coss, axis=0)


def _freq_logit_kernel(fps_ref, wave_ref, hann_ref, seed_ref, out_ref):
    # fps_ref  : SMEM (B,)            f32  (scalar prefetch)
    # wave_ref : VMEM (TB, J, C)      f32  wave, zero padded to J*C samples
    # hann_ref : VMEM (J, C)          f32  hanning window (zero padded)
    # seed_ref : VMEM (16, F_PAD)     f32  rows 0..7:   c  * 2*pi*bpm (c=0..7)
    #                                      rows 8..15: C*j * 2*pi*bpm (j=0..7)
    # out_ref  : VMEM (TB, F_PAD)     f32  dense 2-D output (lane-dense)
    g = pl.program_id(0)
    tb, J, C = wave_ref.shape
    n_small = C // SEED
    n_big = J // SEED

    # Hoisted constant loads; the per-row loop must not re-broadcast these.
    hann = hann_ref[...]                      # (J, C)
    seed_base = seed_ref[...]                 # (16, F_PAD)

    @pl.loop(0, tb)                           # bounded live ranges per row
    def _(r):
        inv_fps = 1.0 / fps_ref[g * tb + r]
        args = seed_base * inv_fps            # (16, F_PAD) seed angles
        sn = jnp.sin(args)                    # the ONLY exact trig per row
        cs = jnp.cos(args)                    # (8 vregs each incl. lane pad)

        # Full tables: sin/cos(c*theta), c in [0,C); sin/cos(C*j*theta), j in [0,J)
        sin_small, cos_small = _derive_tables(sn[0:SEED], cs[0:SEED], n_small)
        sin_big, cos_big = _derive_tables(sn[SEED:2 * SEED],
                                          cs[SEED:2 * SEED], n_big)

        preds = wave_ref[r] * hann            # (J, C)

        # Per-chunk reduction over c: ONE fused MXU matmul per row.
        #   p[:, :F_PAD] = sum_c preds[j,c]*sin(c*theta)
        #   p[:, F_PAD:] = sum_c preds[j,c]*cos(c*theta)
        # Default MXU precision kept; MXU has large slack so Precision.HIGHEST
        # could be enabled if downstream needs tighter per-bin values.
        rhs = jnp.concatenate([sin_small, cos_small], axis=1)   # (C, 2*F_PAD)
        p = jnp.dot(preds, rhs, preferred_element_type=jnp.float32)
        p_sin = p[:, :F_PAD]                  # lane-tile aligned slices (free)
        p_cos = p[:, F_PAD:]

        # Angle addition + reduction over chunks j (VPU elementwise + XLU sum).
        s = jnp.sum(sin_big * p_cos + cos_big * p_sin, axis=0, keepdims=True)
        c = jnp.sum(cos_big * p_cos - sin_big * p_sin, axis=0, keepdims=True)

        out_ref[pl.ds(r, 1), :] = s * s + c * c      # (1, F_PAD) row store


def _dual_tensorcore():
    """Heuristic: v7x has 2 TensorCores per chip; v5e/v6e have 1."""
    try:
        kind = str(jax.devices()[0].device_kind).lower()
    except Exception:
        return False
    return "v7" in kind


def _pick_tb(B, dual_core):
    """Batch rows per grid step.  Single-TC parts: maximize TB (fewest
    ~0.35us grid steps, grid may be 1).  Dual-TC (v7x): keep >= 2 grid steps
    so the 'parallel' axis can shard across both TensorCores."""
    min_steps = 2 if dual_core else 1
    for tb in (16, 8, 4, 2, 1):
        if B % tb == 0 and B // tb >= min_steps:
            return tb
    return 1


def freq_logit(wave, fps, T=T_DEFAULT):
    """Pallas implementation of FreqLogit.forward.

    wave: (B, T) float32
    fps : (B,)   float32
    returns: (B, F) float32, F = 140
    """
    B = wave.shape[0]
    assert wave.shape == (B, T)

    J, C = _pick_time_tiling(T)          # (16, 24) for T = 300
    T_pad = J * C
    TB = _pick_tb(B, _dual_tensorcore())

    # Module constants (deterministic, built in-script; float64 -> float32).
    bpm_pad = np.zeros((F_PAD,), dtype=np.float64)
    bpm_pad[:F] = np.arange(LOW_BOUND, HIGH_BOUND, dtype=np.float64) / 60.0
    # Pad lanes use bpm = 0 -> finite garbage in out[:, F:]; the wrapper
    # slice [:, :F] below must never be dropped.
    two_pi_bpm = 2.0 * math.pi * bpm_pad                          # (F_PAD,)
    seed_idx = np.concatenate([np.arange(SEED, dtype=np.float64),       # c
                               C * np.arange(SEED, dtype=np.float64)])  # C*j
    seed_args = (seed_idx[:, None] * two_pi_bpm[None, :]).astype(np.float32)

    hann = np.zeros((T_pad,), dtype=np.float32)
    hann[:T] = np.hanning(T).astype(np.float32)
    hann_jc = hann.reshape(J, C)

    # Zero-pad the wave to J*C samples (hann is zero there anyway) and
    # pre-split time into (J, C) chunks so the kernel needs no reshapes.
    wave_p = jnp.pad(wave.astype(jnp.float32), ((0, 0), (0, T_pad - T)))
    wave_jc = wave_p.reshape(B, J, C)
    fps1 = fps.astype(jnp.float32).reshape(B)

    grid_spec = pltpu.PrefetchScalarGridSpec(
        num_scalar_prefetch=1,                  # fps -> SMEM
        grid=(B // TB,),
        in_specs=[
            pl.BlockSpec((TB, J, C), lambda g, fps_ref: (g, 0, 0)),
            pl.BlockSpec((J, C), lambda g, fps_ref: (0, 0)),
            pl.BlockSpec((2 * SEED, F_PAD), lambda g, fps_ref: (0, 0)),
        ],
        out_specs=pl.BlockSpec((TB, F_PAD), lambda g, fps_ref: (g, 0)),
    )

    out = pl.pallas_call(
        _freq_logit_kernel,
        out_shape=jax.ShapeDtypeStruct((B, F_PAD), jnp.float32),
        grid_spec=grid_spec,
        compiler_params=pltpu.CompilerParams(
            dimension_semantics=("parallel",)),
    )(fps1, wave_jc, jnp.asarray(hann_jc), jnp.asarray(seed_args))

    return out[:, :F]


def _reference(wave, fps, T=T_DEFAULT):
    """Pure-JAX reference matching the PyTorch forward."""
    B = wave.shape[0]
    bpm_range = jnp.arange(LOW_BOUND, HIGH_BOUND, dtype=jnp.float32) / 60.0
    two_pi_n = 2.0 * math.pi * jnp.arange(0, T, dtype=jnp.float32)
    hanning = jnp.asarray(np.hanning(T), dtype=jnp.float32)

    k = (bpm_range[None, :] / fps[:, None]).reshape(B, -1, 1)       # (B, F, 1)
    preds = (wave * hanning[None, :]).reshape(B, 1, -1)             # (B, 1, T)
    temp = jnp.broadcast_to(two_pi_n, (B, T)).reshape(B, 1, -1)     # (B, 1, T)
    s = jnp.sum(preds * jnp.sin(k * temp), axis=-1)
    c = jnp.sum(preds * jnp.cos(k * temp), axis=-1)
    return s ** 2 + c ** 2                                          # (B, F)


if __name__ == "__main__":
    key = jax.random.PRNGKey(0)
    k_wave, k_fps = jax.random.split(key)

    B, T = 8, T_DEFAULT
    wave = jax.random.normal(k_wave, (B, T), dtype=jnp.float32)
    fps = jax.random.uniform(k_fps, (B,), dtype=jnp.float32,
                             minval=20.0, maxval=35.0)

    out = jax.block_until_ready(freq_logit(wave, fps, T=T))
    ref = jax.block_until_ready(_reference(wave, fps, T=T))

    assert out.shape == (B, F)
    # Output magnitude is O(1e2); atol=1e-1 (~1e-3 of typical scale) covers
    # MXU low-precision-pass rounding plus large-angle f32 argument-rounding
    # differences between the factorized (angle-addition) evaluation and the
    # direct (T, F) reference on rare near-cancelled frequency bins.
    np.testing.assert_allclose(np.asarray(out), np.asarray(ref),
                               rtol=2e-2, atol=1e-1)

    print("KERNEL_OK")
</pallas_src>

<mosaic_0001>
module attributes {stable_mosaic.version = 11 : i64} {
  func.func @_freq_logit_kernel(%arg0: i32, %arg1: memref<8xf32, #tpu.memory_space<smem>>, %arg2: memref<8x16x24xf32, #tpu.memory_space<vmem>>, %arg3: memref<16x24xf32, #tpu.memory_space<vmem>>, %arg4: memref<16x256xf32, #tpu.memory_space<vmem>>, %arg5: memref<8x256xf32, #tpu.memory_space<vmem>>) attributes {dimension_semantics = [#tpu.dimension_semantics<parallel>], iteration_bounds = array<i64: 1>, scalar_prefetch = 1 : i64, scratch_operands = 0 : i64, tpu.core_type = #tpu.core_type<tc>, window_params = [{transform_indices = @transform_0, window_bounds = array<i64: 8, 16, 24>}, {pipeline_mode = #tpu.pipeline_mode<synchronous>, transform_indices = @transform_1, window_bounds = array<i64: 16, 24>}, {pipeline_mode = #tpu.pipeline_mode<synchronous>, transform_indices = @transform_2, window_bounds = array<i64: 16, 256>}, {transform_indices = @transform_3, window_bounds = array<i64: 8, 256>}]} {
    %c0 = arith.constant 0 : index
    %c0_0 = arith.constant 0 : index
    %0 = vector.load %arg3[%c0, %c0_0] : memref<16x24xf32, #tpu.memory_space<vmem>>, vector<16x24xf32>
    %c0_1 = arith.constant 0 : index
    %c0_2 = arith.constant 0 : index
    %1 = vector.load %arg4[%c0_1, %c0_2] : memref<16x256xf32, #tpu.memory_space<vmem>>, vector<16x256xf32>
    %c0_i32 = arith.constant 0 : i32
    %c8_i32 = arith.constant 8 : i32
    %2 = arith.addi %c0_i32, %c8_i32 : i32
    %c1_i32 = arith.constant 1 : i32
    scf.for %arg6 = %c0_i32 to %2 step %c1_i32  : i32 {
      %c1_i32_4 = arith.constant 1 : i32
      %3 = arith.muli %arg6, %c1_i32_4 : i32
      %c0_i32_5 = arith.constant 0 : i32
      %4 = arith.addi %c0_i32_5, %3 : i32
      %c8_i32_6 = arith.constant 8 : i32
      %5 = arith.muli %arg0, %c8_i32_6 : i32
      %6 = arith.addi %5, %4 : i32
      %7 = arith.index_cast %6 : i32 to index
      %8 = memref.load %arg1[%7] : memref<8xf32, #tpu.memory_space<smem>>
      %cst = arith.constant 1.000000e+00 : f32
      %9 = arith.divf %cst, %8 : f32
      %10 = vector.broadcast %9 : f32 to vector<16x256xf32>
      %11 = arith.mulf %1, %10 : vector<16x256xf32>
      %12 = math.sin %11 : vector<16x256xf32>
      %13 = math.cos %11 : vector<16x256xf32>
      %14 = vector.extract_strided_slice %12 {offsets = [0, 0], sizes = [8, 256], strides = [1, 1]} : vector<16x256xf32> to vector<8x256xf32>
      %15 = vector.extract_strided_slice %13 {offsets = [0, 0], sizes = [8, 256], strides = [1, 1]} : vector<16x256xf32> to vector<8x256xf32>
      %16 = vector.extract_strided_slice %14 {offsets = [4, 0], sizes = [1, 256], strides = [1, 1]} : vector<8x256xf32> to vector<1x256xf32>
      %17 = vector.extract_strided_slice %15 {offsets = [4, 0], sizes = [1, 256], strides = [1, 1]} : vector<8x256xf32> to vector<1x256xf32>
      %cst_7 = arith.constant 2.000000e+00 : f32
      %18 = vector.broadcast %cst_7 : f32 to vector<1x256xf32>
      %19 = arith.mulf %18, %16 : vector<1x256xf32>
      %20 = arith.mulf %19, %17 : vector<1x256xf32>
      %cst_8 = arith.constant 2.000000e+00 : f32
      %21 = vector.broadcast %cst_8 : f32 to vector<1x256xf32>
      %22 = arith.mulf %21, %16 : vector<1x256xf32>
      %23 = arith.mulf %22, %16 : vector<1x256xf32>
      %cst_9 = arith.constant 1.000000e+00 : f32
      %24 = vector.broadcast %cst_9 : f32 to vector<1x256xf32>
      %25 = arith.subf %24, %23 : vector<1x256xf32>
      %26 = vector.broadcast %25 : vector<1x256xf32> to vector<8x256xf32>
      %27 = arith.mulf %14, %26 : vector<8x256xf32>
      %28 = vector.broadcast %20 : vector<1x256xf32> to vector<8x256xf32>
      %29 = arith.mulf %15, %28 : vector<8x256xf32>
      %30 = arith.addf %27, %29 : vector<8x256xf32>
      %31 = vector.broadcast %25 : vector<1x256xf32> to vector<8x256xf32>
      %32 = arith.mulf %15, %31 : vector<8x256xf32>
      %33 = vector.broadcast %20 : vector<1x256xf32> to vector<8x256xf32>
      %34 = arith.mulf %14, %33 : vector<8x256xf32>
      %35 = arith.subf %32, %34 : vector<8x256xf32>
      %36 = arith.mulf %20, %25 : vector<1x256xf32>
      %37 = arith.mulf %25, %20 : vector<1x256xf32>
      %38 = arith.addf %36, %37 : vector<1x256xf32>
      %39 = arith.mulf %25, %25 : vector<1x256xf32>
      %40 = arith.mulf %20, %20 : vector<1x256xf32>
      %41 = arith.subf %39, %40 : vector<1x256xf32>
      %42 = vector.broadcast %41 : vector<1x256xf32> to vector<8x256xf32>
      %43 = arith.mulf %14, %42 : vector<8x256xf32>
      %44 = vector.broadcast %38 : vector<1x256xf32> to vector<8x256xf32>
      %45 = arith.mulf %15, %44 : vector<8x256xf32>
      %46 = arith.addf %43, %45 : vector<8x256xf32>
      %47 = vector.broadcast %41 : vector<1x256xf32> to vector<8x256xf32>
      %48 = arith.mulf %15, %47 : vector<8x256xf32>
      %49 = vector.broadcast %38 : vector<1x256xf32> to vector<8x256xf32>
      %50 = arith.mulf %14, %49 : vector<8x256xf32>
      %51 = arith.subf %48, %50 : vector<8x256xf32>
      %52 = tpu.concatenate %14, %30, %46 in 0 : vector<8x256xf32>, vector<8x256xf32>, vector<8x256xf32> -> vector<24x256xf32>
      %53 = tpu.concatenate %15, %35, %51 in 0 : vector<8x256xf32>, vector<8x256xf32>, vector<8x256xf32> -> vector<24x256xf32>
      %54 = vector.extract_strided_slice %12 {offsets = [8, 0], sizes = [8, 256], strides = [1, 1]} : vector<16x256xf32> to vector<8x256xf32>
      %55 = vector.extract_strided_slice %13 {offsets = [8, 0], sizes = [8, 256], strides = [1, 1]} : vector<16x256xf32> to vector<8x256xf32>
      %56 = vector.extract_strided_slice %54 {offsets = [4, 0], sizes = [1, 256], strides = [1, 1]} : vector<8x256xf32> to vector<1x256xf32>
      %57 = vector.extract_strided_slice %55 {offsets = [4, 0], sizes = [1, 256], strides = [1, 1]} : vector<8x256xf32> to vector<1x256xf32>
      %cst_10 = arith.constant 2.000000e+00 : f32
      %58 = vector.broadcast %cst_10 : f32 to vector<1x256xf32>
      %59 = arith.mulf %58, %56 : vector<1x256xf32>
      %60 = arith.mulf %59, %57 : vector<1x256xf32>
      %cst_11 = arith.constant 2.000000e+00 : f32
      %61 = vector.broadcast %cst_11 : f32 to vector<1x256xf32>
      %62 = arith.mulf %61, %56 : vector<1x256xf32>
      %63 = arith.mulf %62, %56 : vector<1x256xf32>
      %cst_12 = arith.constant 1.000000e+00 : f32
      %64 = vector.broadcast %cst_12 : f32 to vector<1x256xf32>
      %65 = arith.subf %64, %63 : vector<1x256xf32>
      %66 = vector.broadcast %65 : vector<1x256xf32> to vector<8x256xf32>
      %67 = arith.mulf %54, %66 : vector<8x256xf32>
      %68 = vector.broadcast %60 : vector<1x256xf32> to vector<8x256xf32>
      %69 = arith.mulf %55, %68 : vector<8x256xf32>
      %70 = arith.addf %67, %69 : vector<8x256xf32>
      %71 = vector.broadcast %65 : vector<1x256xf32> to vector<8x256xf32>
      %72 = arith.mulf %55, %71 : vector<8x256xf32>
      %73 = vector.broadcast %60 : vector<1x256xf32> to vector<8x256xf32>
      %74 = arith.mulf %54, %73 : vector<8x256xf32>
      %75 = arith.subf %72, %74 : vector<8x256xf32>
      %76 = tpu.concatenate %54, %70 in 0 : vector<8x256xf32>, vector<8x256xf32> -> vector<16x256xf32>
      %77 = tpu.concatenate %55, %75 in 0 : vector<8x256xf32>, vector<8x256xf32> -> vector<16x256xf32>
      %78 = arith.index_cast %4 : i32 to index
      %c0_13 = arith.constant 0 : index
      %c0_14 = arith.constant 0 : index
      %79 = vector.load %arg2[%78, %c0_13, %c0_14] : memref<8x16x24xf32, #tpu.memory_space<vmem>>, vector<1x16x24xf32>
      %80 = vector.shape_cast %79 : vector<1x16x24xf32> to vector<16x24xf32>
      %81 = arith.mulf %80, %0 : vector<16x24xf32>
      %82 = tpu.concatenate %52, %53 in 1 : vector<24x256xf32>, vector<24x256xf32> -> vector<24x512xf32>
      %cst_15 = arith.constant dense<0.000000e+00> : vector<16x512xf32>
      %83 = tpu.matmul %81, %82, %cst_15 {dimension_numbers = #tpu.dot_dimension_numbers<[1], [0], [0], [1], [0, 0, 1, 1], [], []>} : vector<16x24xf32>, vector<24x512xf32>, vector<16x512xf32> -> vector<16x512xf32>
      %84 = vector.extract_strided_slice %83 {offsets = [0, 0], sizes = [16, 256], strides = [1, 1]} : vector<16x512xf32> to vector<16x256xf32>
      %85 = vector.extract_strided_slice %83 {offsets = [0, 256], sizes = [16, 256], strides = [1, 1]} : vector<16x512xf32> to vector<16x256xf32>
      %86 = arith.mulf %76, %85 : vector<16x256xf32>
      %87 = arith.mulf %77, %84 : vector<16x256xf32>
      %88 = arith.addf %86, %87 : vector<16x256xf32>
      %cst_16 = arith.constant dense<0.000000e+00> : vector<256xf32>
      %89 = vector.multi_reduction <add>, %88, %cst_16 [0] : vector<16x256xf32> to vector<256xf32>
      %90 = vector.shape_cast %89 : vector<256xf32> to vector<1x256xf32>
      %91 = arith.mulf %77, %85 : vector<16x256xf32>
      %92 = arith.mulf %76, %84 : vector<16x256xf32>
      %93 = arith.subf %91, %92 : vector<16x256xf32>
      %cst_17 = arith.constant dense<0.000000e+00> : vector<256xf32>
      %94 = vector.multi_reduction <add>, %93, %cst_17 [0] : vector<16x256xf32> to vector<256xf32>
      %95 = vector.shape_cast %94 : vector<256xf32> to vector<1x256xf32>
      %96 = arith.mulf %90, %90 : vector<1x256xf32>
      %97 = arith.mulf %95, %95 : vector<1x256xf32>
      %98 = arith.addf %96, %97 : vector<1x256xf32>
      %99 = arith.index_cast %4 : i32 to index
      %c0_18 = arith.constant 0 : index
      %100 = vector.load %arg5[%99, %c0_18] : memref<8x256xf32, #tpu.memory_space<vmem>>, vector<1x256xf32>
      tpu.vector_store %arg5[%99, %c0_18], %98 {strides = array<i32>} : memref<8x256xf32, #tpu.memory_space<vmem>>, vector<1x256xf32>,
    }
    %c8_i32_3 = arith.constant 8 : i32
    return
  }
  func.func @transform_0(%arg0: i32, %arg1: memref<8xf32, #tpu.memory_space<smem>>) -> (i32, i32, i32) {
    %c0_i32 = arith.constant 0 : i32
    %c0_i32_0 = arith.constant 0 : i32
    %c0_i32_1 = arith.constant 0 : i32
    return %arg0, %c0_i32, %c0_i32_0 : i32, i32, i32
  }
  func.func @transform_1(%arg0: i32, %arg1: memref<8xf32, #tpu.memory_space<smem>>) -> (i32, i32) {
    %c0_i32 = arith.constant 0 : i32
    %c0_i32_0 = arith.constant 0 : i32
    %c0_i32_1 = arith.constant 0 : i32
    return %c0_i32, %c0_i32_0 : i32, i32
  }
  func.func @transform_2(%arg0: i32, %arg1: memref<8xf32, #tpu.memory_space<smem>>) -> (i32, i32) {
    %c0_i32 = arith.constant 0 : i32
    %c0_i32_0 = arith.constant 0 : i32
    %c0_i32_1 = arith.constant 0 : i32
    return %c0_i32, %c0_i32_0 : i32, i32
  }
  func.func @transform_3(%arg0: i32, %arg1: memref<8xf32, #tpu.memory_space<smem>>) -> (i32, i32) {
    %c0_i32 = arith.constant 0 : i32
    %c0_i32_0 = arith.constant 0 : i32
    return %arg0, %c0_i32 : i32, i32
  }
}

</mosaic_0001>

<llo_original>
// kernel: tpu_custom_call.1
$region0: #{tpu_custom_call.1}
  #allocation0 [shape = 'u32[]', space=smem, size = 0x4, offset = 0x4, fixed_abs, tag = 'smem constant byte address 0x4 - core index']
  #allocation1 [shape = 'u32[144,128]{1,0:T(1,128)}', space=vmem, size = 0x12000, scoped, tag = 'internal scratch']
  #allocation2 [shape = 's32[1]{0}', space=sflag, size = 0x4, scoped, tag = 'scoped memory for tpu_custom_call.1']
  #allocation3 [shape = 'u8[512]{0}', space=smem, size = 0x200, scoped, tag = 'prefetched SMEM operand 0']
  %s0 = inlined_call_operand.hbm [shape: f32[8], index: 0, kind: input, shape index: {}]
  %s1 = inlined_call_operand.hbm [shape: f32[8,16,24], index: 1, kind: input, shape index: {}]
  %s2 = inlined_call_operand.hbm [shape: f32[16,24], index: 2, kind: input, shape index: {}]
  %s3 = inlined_call_operand.hbm [shape: f32[16,256], index: 3, kind: input, shape index: {}]
  %s4 = inlined_call_operand.hbm [shape: f32[8,256], index: 4, kind: output, shape index: {}]
  %s5 = sld [smem:[#allocation0]]
  $region41: #{tpu_custom_call.1} parent=0
    _
  %s7 = ssub.s32 1, %s5
  %s8 = scalar_select 0, %s7, %s5
  %10 = dma.hbm_to_smem %s0, 16, [#allocation3], [#allocation2]
  %11 = dma.done [#allocation2], 16
  %12 = sfence
  $region1: #{tpu_custom_call.1} parent=0
    #allocation4 [shape = 'u8[65536]{0}', space=vmem, size = 0x10000, scoped, tag = 'input window, operand 1, single buffered']
    #allocation5 [shape = 's32[1]{0}', space=sflag, size = 0x4, scoped, tag = 'scoped memory for tpu_custom_call.1']
    #allocation6 [shape = 's32[1]{0}', space=sflag, size = 0x4, scoped, tag = 'scoped memory for tpu_custom_call.1']
    #allocation7 [shape = 'u8[8192]{0}', space=vmem, size = 0x2000, scoped, tag = 'input window, operand 2, single buffered']
    #allocation8 [shape = 's32[1]{0}', space=sflag, size = 0x4, scoped, tag = 'scoped memory for tpu_custom_call.1']
    #allocation9 [shape = 'u8[16384]{0}', space=vmem, size = 0x4000, scoped, tag = 'input window, operand 3, single buffered']
    #allocation10 [shape = 'u8[8192]{0}', space=vmem, size = 0x2000, scoped, tag = 'output window, operand 0, single buffered']
    %13 = vsyncpa [#allocation5], 0
    %14 = vsyncpa [#allocation8], 0
    %15 = vsyncpa [#allocation6], 0
    // Predicated region
    $region2: #{tpu_custom_call.1} parent=1 // pred_check
      _
    $region3: #{tpu_custom_call.1} parent=1 // pred_check_branch
      %17 = sbr.rel (0) target = $region5
    $region4: #{tpu_custom_call.1} parent=1 // pred_region
      %s19 = ssub.s32 2048, 2048
      %20 = vsyncadd [#allocation5], %s19
      %s21 = sshll.u32 [#allocation4], 4
      %s22 = int_to_ptr.vmem [resolvable:$true] %s21
      %27 = dma.hbm_to_vmem [thread:$0]  %s1, 2048, %s22, [#allocation5], 128, 128, 8
    $region5: #{tpu_custom_call.1} parent=1 // pred_fallthru
      _
    // Predicated region
    $region6: #{tpu_custom_call.1} parent=1 // pred_check
      _
    $region7: #{tpu_custom_call.1} parent=1 // pred_check_branch
      %29 = sbr.rel (0) target = $region9
    $region8: #{tpu_custom_call.1} parent=1 // pred_region
      %s31 = ssub.s32 256, 256
      %32 = vsyncadd [#allocation8], %s31
      %s33 = sshll.u32 [#allocation7], 4
      %s34 = int_to_ptr.vmem [resolvable:$true] %s33
      %39 = dma.hbm_to_vmem [thread:$0]  %s2, 256, %s34, [#allocation8], 128, 128, 8
    $region9: #{tpu_custom_call.1} parent=1 // pred_fallthru
      _
    // Predicated region
    $region10: #{tpu_custom_call.1} parent=1 // pred_check
      _
    $region11: #{tpu_custom_call.1} parent=1 // pred_check_branch
      %41 = sbr.rel (0) target = $region13
    $region12: #{tpu_custom_call.1} parent=1 // pred_region
      %s43 = ssub.s32 512, 512
      %44 = vsyncadd [#allocation8], %s43
      %s45 = sshll.u32 [#allocation9], 4
      %s46 = int_to_ptr.vmem [resolvable:$true] %s45
      %51 = dma.hbm_to_vmem [thread:$0]  %s3, 512, %s46, [#allocation8], 256, 256, 16
    $region13: #{tpu_custom_call.1} parent=1 // pred_fallthru
      _
    // Predicated region
    $region14: #{tpu_custom_call.1} parent=1 // pred_check
      _
    $region15: #{tpu_custom_call.1} parent=1 // pred_check_branch
      %53 = sbr.rel (0) target = $region17
    $region16: #{tpu_custom_call.1} parent=1 // pred_region
      %54 = dma.done [#allocation5], 2048
    $region17: #{tpu_custom_call.1} parent=1 // pred_fallthru
      _
    // Predicated region
    $region18: #{tpu_custom_call.1} parent=1 // pred_check
      _
    $region19: #{tpu_custom_call.1} parent=1 // pred_check_branch
      %56 = sbr.rel (0) target = $region21
    $region20: #{tpu_custom_call.1} parent=1 // pred_region
      %57 = dma.done [#allocation8], 256
    $region21: #{tpu_custom_call.1} parent=1 // pred_fallthru
      _
    // Predicated region
    $region22: #{tpu_custom_call.1} parent=1 // pred_check
      _
    $region23: #{tpu_custom_call.1} parent=1 // pred_check_branch
      %59 = sbr.rel (0) target = $region25
    $region24: #{tpu_custom_call.1} parent=1 // pred_region
      %60 = dma.done [#allocation8], 512
    $region25: #{tpu_custom_call.1} parent=1 // pred_fallthru
      _
    %v61 = vld [vmem:[#allocation7] sm:$0xff]
    %v62 = vld [vmem:[#allocation7 + $0x8] sm:$0xff]
    %v63 = vld [vmem:[#allocation9] sm:$0xff]
    %v64 = vld [vmem:[#allocation9 + $0x8] sm:$0xff]
    %v65 = vld [vmem:[#allocation9 + $0x10] sm:$0xff]
    %v66 = vld [vmem:[#allocation9 + $0x18] sm:$0xff]
    loop: start=0, step=1, limit=8
    $region26: #{tpu_custom_call.1} parent=1 // loop_pre_header
      _
    $region27: #{tpu_custom_call.1} parent=1 // loop_header
      %s68 = sphi 0, %s72
      %p69 = scmp.ge.s32.totalorder %s68, 8
    $region28: #{tpu_custom_call.1} parent=1 // loop_header_branch
      %71 = sbr.rel (%p69) target = $region32
    $region29: #{tpu_custom_call.1} parent=1 // loop_body
      %s73 = smul.u32 0, 8
      %s74 = sadd.s32 %s73, %s68
      %s75 = sld [smem:[#allocation3 + %s74]]
      %v76 = vstv %s75
      %v77 = vrcp.pop %v76
      %s78 = vtos %v77
      %v79 = vstv %s78
      %v80 = vmul.f32 %v63, %v79
      %v81 = vmul.f32 %v64, %v79
      %v82 = vmul.f32 %v65, %v79
      %v83 = vmul.f32 %v66, %v79
      %v84 = vand.u32 2147483647, %v80
      %vm85 = vcmp.le.f32.partialorder %v84, 0.7853982
      %vm86 = vcmp.lt.s32.totalorder %v80, 0
      %v87 = vand.u32 %v80, 2139095040
      %v88 = vshrl.u32 %v87, 23
      %v89 = vsub.s32 %v88, 127
      %v90 = vand.u32 2147483647, %v80
      %v91 = vand.u32 %v90, 8388607
      %v92 = vor.u32 %v91, 8388608
      %v93 = vsub.s32 0, %v92
      %v94 = vadd.s32 %v89, 1
      %vm95 = vcmp.gt.s32.totalorder %v94, 0
      %v96 = vsel %vm95, %v94, 0
      %v97 = vshrl.u32 %v96, 5
      %v98 = vand.u32 %v96, 31
      %v99 = vsub.s32 32, %v98
      %v100 = vshrl.u32 683565275, %v99
      %v101 = vshll.u32 683565275, %v98
      %v102 = vshrl.u32 2475754826, %v99
      %v103 = vor.u32 %v101, %v102
      %v104 = vshll.u32 2475754826, %v98
      %v105 = vshrl.u32 2131351028, %v99
      %v106 = vor.u32 %v104, %v105
      %v107 = vshll.u32 2131351028, %v98
      %v108 = vshrl.u32 2102212464, %v99
      %v109 = vor.u32 %v107, %v108
      %v110 = vshll.u32 2102212464, %v98
      %v111 = vshrl.u32 920167782, %v99
      %v112 = vor.u32 %v110, %v111
      %v113 = vshll.u32 920167782, %v98
      %v114 = vshrl.u32 1326507024, %v99
      %v115 = vor.u32 %v113, %v114
      %vm116 = vcmp.lt.s32.totalorder %v97, 1
      %vm117 = vcmp.lt.s32.totalorder %v97, 2
      %vm118 = vcmp.lt.s32.totalorder %v97, 3
      %vm119 = vcmp.lt.s32.totalorder %v97, 4
      %v120 = vsel %vm116, %v100, %v103
      %v121 = vsel %vm119, %v109, 2102212464
      %v122 = vsel %vm118, %v106, %v121
      %v123 = vsel %vm117, %v120, %v122
      %v124 = vsel %vm116, %v103, %v106
      %v125 = vsel %vm119, %v112, 920167782
      %v126 = vsel %vm118, %v109, %v125
      %v127 = vsel %vm117, %v124, %v126
      %v128 = vsel %vm116, %v106, %v109
      %v129 = vsel %vm119, %v115, 1326507024
      %v130 = vsel %vm118, %v112, %v129
      %v131 = vsel %vm117, %v128, %v130
      %v132 = vshll.u32 %v92, 8
      %v133 = vmul.u32.u64.compose %v132, %v131
      %v134 = vextract.low.u32 %v133
      %v135 = vextract.high.u32 %v133
      %v136 = vmul.u32.u64.compose %v132, %v127
      %v137 = vextract.low.u32 %v136
      %v138 = vextract.high.u32 %v136
      %v139 = vmul.u32 %v132, %v123
      %v140 = vadd.s32 %v135, %v137
      %vm141 = vc.u32 %v135, %v137
      %v142 = vadd.s32 %v138, 1
      %v143 = vsel %vm141, %v142, %v138
      %v144 = vadd.s32 %v139, %v143
      %v145 = vadd.s32 %v144, 536870912
      %v146 = vshrl.u32 %v145, 30
      %v147 = vshll.u32 %v146, 30
      %v148 = vsub.s32 %v144, %v147
      %vm149 = vcmp.lt.s32.totalorder %v148, 0
      %v150 = vsub.s32 0, %v148
      %v151 = vsel %vm149, %v150, %v148
      %v152 = vclz %v151
      %v153 = vsub.s32 %v152, 2
      %vm154 = vcmp.gt.s32.totalorder 0, %v153
      %v155 = vsel %vm154, 0, %v153
      %v156 = vsub.s32 32, %v155
      %v157 = vshll.u32 %v148, %v155
      %v158 = vshrl.u32 %v140, %v156
      %v159 = vor.u32 %v157, %v158
      %v160 = vsub.s32 4294967266, %v155
      %v161 = vadd.s32 %v160, 127
      %v162 = vshll.u32 %v161, 23
      %v163 = vor.u32 4788187, %v162
      %v164 = vand.u32 2147483647, %v163
      %v166 = vcvt.s32.f32 %v159
      %v167 = vmul.f32 %v166, %v164
      %v168 = vxor.u32 %v167, 2147483648
      %v169 = vsel %vm86, %v168, %v167
      %v170 = vsub.s32 4, %v146
      %v171 = vsel %vm86, %v170, %v146
      %v172 = vsel %vm85, %v80, %v169
      %v173 = vsel %vm85, 0, %v171
      %v174 = vcosq.f32.pop %v172
      %v175 = vsinq.f32.pop %v172
      %vm176 = vweird.f32 %v80
      %v177 = vadd.s32 %v173, 3
      %v178 = vand.u32 %v177, 3
      %vm179 = vcmp.lt.s32.totalorder %v178, 2
      %vm180 = vcmp.eq.s32.totalorder %v178, 0
      %v181 = vxor.u32 %v175, 2147483648
      %v182 = vsel %vm180, %v174, %v181
      %vm183 = vcmp.eq.s32.totalorder %v178, 2
      %v184 = vxor.u32 %v174, 2147483648
      %v185 = vsel %vm183, %v184, %v175
      %v186 = vsel %vm179, %v182, %v185
      %v187 = vsel %vm176, nan, %v186
      %v188 = vand.u32 2147483647, %v81
      %vm189 = vcmp.le.f32.partialorder %v188, 0.7853982
      %vm190 = vcmp.lt.s32.totalorder %v81, 0
      %v191 = vand.u32 %v81, 2139095040
      %v192 = vshrl.u32 %v191, 23
      %v193 = vsub.s32 %v192, 127
      %v194 = vand.u32 2147483647, %v81
      %v195 = vand.u32 %v194, 8388607
      %v196 = vor.u32 %v195, 8388608
      %v197 = vsub.s32 0, %v196
      %v198 = vadd.s32 %v193, 1
      %vm199 = vcmp.gt.s32.totalorder %v198, 0
      %v200 = vsel %vm199, %v198, 0
      %v201 = vshrl.u32 %v200, 5
      %v202 = vand.u32 %v200, 31
      %v203 = vsub.s32 32, %v202
      %v204 = vshrl.u32 683565275, %v203
      %v205 = vshll.u32 683565275, %v202
      %v206 = vshrl.u32 2475754826, %v203
      %v207 = vor.u32 %v205, %v206
      %v208 = vshll.u32 2475754826, %v202
      %v209 = vshrl.u32 2131351028, %v203
      %v210 = vor.u32 %v208, %v209
      %v211 = vshll.u32 2131351028, %v202
      %v212 = vshrl.u32 2102212464, %v203
      %v213 = vor.u32 %v211, %v212
      %v214 = vshll.u32 2102212464, %v202
      %v215 = vshrl.u32 920167782, %v203
      %v216 = vor.u32 %v214, %v215
      %v217 = vshll.u32 920167782, %v202
      %v218 = vshrl.u32 1326507024, %v203
      %v219 = vor.u32 %v217, %v218
      %vm220 = vcmp.lt.s32.totalorder %v201, 1
      %vm221 = vcmp.lt.s32.totalorder %v201, 2
      %vm222 = vcmp.lt.s32.totalorder %v201, 3
      %vm223 = vcmp.lt.s32.totalorder %v201, 4
      %v224 = vsel %vm220, %v204, %v207
      %v225 = vsel %vm223, %v213, 2102212464
      %v226 = vsel %vm222, %v210, %v225
      %v227 = vsel %vm221, %v224, %v226
      %v228 = vsel %vm220, %v207, %v210
      %v229 = vsel %vm223, %v216, 920167782
      %v230 = vsel %vm222, %v213, %v229
      %v231 = vsel %vm221, %v228, %v230
      %v232 = vsel %vm220, %v210, %v213
      %v233 = vsel %vm223, %v219, 1326507024
      %v234 = vsel %vm222, %v216, %v233
      %v235 = vsel %vm221, %v232, %v234
      %v236 = vshll.u32 %v196, 8
      %v237 = vmul.u32.u64.compose %v236, %v235
      %v238 = vextract.low.u32 %v237
      %v239 = vextract.high.u32 %v237
      %v240 = vmul.u32.u64.compose %v236, %v231
      %v241 = vextract.low.u32 %v240
      %v242 = vextract.high.u32 %v240
      %v243 = vmul.u32 %v236, %v227
      %v244 = vadd.s32 %v239, %v241
      %vm245 = vc.u32 %v239, %v241
      %v246 = vadd.s32 %v242, 1
      %v247 = vsel %vm245, %v246, %v242
      %v248 = vadd.s32 %v243, %v247
      %v249 = vadd.s32 %v248, 536870912
      %v250 = vshrl.u32 %v249, 30
      %v251 = vshll.u32 %v250, 30
      %v252 = vsub.s32 %v248, %v251
      %vm253 = vcmp.lt.s32.totalorder %v252, 0
      %v254 = vsub.s32 0, %v252
      %v255 = vsel %vm253, %v254, %v252
      %v256 = vclz %v255
      %v257 = vsub.s32 %v256, 2
      %vm258 = vcmp.gt.s32.totalorder 0, %v257
      %v259 = vsel %vm258, 0, %v257
      %v260 = vsub.s32 32, %v259
      %v261 = vshll.u32 %v252, %v259
      %v262 = vshrl.u32 %v244, %v260
      %v263 = vor.u32 %v261, %v262
      %v264 = vsub.s32 4294967266, %v259
      %v265 = vadd.s32 %v264, 127
      %v266 = vshll.u32 %v265, 23
      %v267 = vor.u32 4788187, %v266
      %v268 = vand.u32 2147483647, %v267
      %v270 = vcvt.s32.f32 %v263
      %v271 = vmul.f32 %v270, %v268
      %v272 = vxor.u32 %v271, 2147483648
      %v273 = vsel %vm190, %v272, %v271
      %v274 = vsub.s32 4, %v250
      %v275 = vsel %vm190, %v274, %v250
      %v276 = vsel %vm189, %v81, %v273
      %v277 = vsel %vm189, 0, %v275
      %v278 = vcosq.f32.pop %v276
      %v279 = vsinq.f32.pop %v276
      %vm280 = vweird.f32 %v81
      %v281 = vadd.s32 %v277, 3
      %v282 = vand.u32 %v281, 3
      %vm283 = vcmp.lt.s32.totalorder %v282, 2
      %vm284 = vcmp.eq.s32.totalorder %v282, 0
      %v285 = vxor.u32 %v279, 2147483648
      %v286 = vsel %vm284, %v278, %v285
      %vm287 = vcmp.eq.s32.totalorder %v282, 2
      %v288 = vxor.u32 %v278, 2147483648
      %v289 = vsel %vm287, %v288, %v279
      %v290 = vsel %vm283, %v286, %v289
      %v291 = vsel %vm280, nan, %v290
      %v292 = vand.u32 2147483647, %v82
      %vm293 = vcmp.le.f32.partialorder %v292, 0.7853982
      %vm294 = vcmp.lt.s32.totalorder %v82, 0
      %v295 = vand.u32 %v82, 2139095040
      %v296 = vshrl.u32 %v295, 23
      %v297 = vsub.s32 %v296, 127
      %v298 = vand.u32 2147483647, %v82
      %v299 = vand.u32 %v298, 8388607
      %v300 = vor.u32 %v299, 8388608
      %v301 = vsub.s32 0, %v300
      %v302 = vadd.s32 %v297, 1
      %vm303 = vcmp.gt.s32.totalorder %v302, 0
      %v304 = vsel %vm303, %v302, 0
      %v305 = vshrl.u32 %v304, 5
      %v306 = vand.u32 %v304, 31
      %v307 = vsub.s32 32, %v306
      %v308 = vshrl.u32 683565275, %v307
      %v309 = vshll.u32 683565275, %v306
      %v310 = vshrl.u32 2475754826, %v307
      %v311 = vor.u32 %v309, %v310
      %v312 = vshll.u32 2475754826, %v306
      %v313 = vshrl.u32 2131351028, %v307
      %v314 = vor.u32 %v312, %v313
      %v315 = vshll.u32 2131351028, %v306
      %v316 = vshrl.u32 2102212464, %v307
      %v317 = vor.u32 %v315, %v316
      %v318 = vshll.u32 2102212464, %v306
      %v319 = vshrl.u32 920167782, %v307
      %v320 = vor.u32 %v318, %v319
      %v321 = vshll.u32 920167782, %v306
      %v322 = vshrl.u32 1326507024, %v307
      %v323 = vor.u32 %v321, %v322
      %vm324 = vcmp.lt.s32.totalorder %v305, 1
      %vm325 = vcmp.lt.s32.totalorder %v305, 2
      %vm326 = vcmp.lt.s32.totalorder %v305, 3
      %vm327 = vcmp.lt.s32.totalorder %v305, 4
      %v328 = vsel %vm324, %v308, %v311
      %v329 = vsel %vm327, %v317, 2102212464
      %v330 = vsel %vm326, %v314, %v329
      %v331 = vsel %vm325, %v328, %v330
      %v332 = vsel %vm324, %v311, %v314
      %v333 = vsel %vm327, %v320, 920167782
      %v334 = vsel %vm326, %v317, %v333
      %v335 = vsel %vm325, %v332, %v334
      %v336 = vsel %vm324, %v314, %v317
      %v337 = vsel %vm327, %v323, 1326507024
      %v338 = vsel %vm326, %v320, %v337
      %v339 = vsel %vm325, %v336, %v338
      %v340 = vshll.u32 %v300, 8
      %v341 = vmul.u32.u64.compose %v340, %v339
      %v342 = vextract.low.u32 %v341
      %v343 = vextract.high.u32 %v341
      %v344 = vmul.u32.u64.compose %v340, %v335
      %v345 = vextract.low.u32 %v344
      %v346 = vextract.high.u32 %v344
      %v347 = vmul.u32 %v340, %v331
      %v348 = vadd.s32 %v343, %v345
      %vm349 = vc.u32 %v343, %v345
      %v350 = vadd.s32 %v346, 1
      %v351 = vsel %vm349, %v350, %v346
      %v352 = vadd.s32 %v347, %v351
      %v353 = vadd.s32 %v352, 536870912
      %v354 = vshrl.u32 %v353, 30
      %v355 = vshll.u32 %v354, 30
      %v356 = vsub.s32 %v352, %v355
      %vm357 = vcmp.lt.s32.totalorder %v356, 0
      %v358 = vsub.s32 0, %v356
      %v359 = vsel %vm357, %v358, %v356
      %v360 = vclz %v359
      %v361 = vsub.s32 %v360, 2
      %vm362 = vcmp.gt.s32.totalorder 0, %v361
      %v363 = vsel %vm362, 0, %v361
      %v364 = vsub.s32 32, %v363
      %v365 = vshll.u32 %v356, %v363
      %v366 = vshrl.u32 %v348, %v364
      %v367 = vor.u32 %v365, %v366
      %v368 = vsub.s32 4294967266, %v363
      %v369 = vadd.s32 %v368, 127
      %v370 = vshll.u32 %v369, 23
      %v371 = vor.u32 4788187, %v370
      %v372 = vand.u32 2147483647, %v371
      %v374 = vcvt.s32.f32 %v367
      %v375 = vmul.f32 %v374, %v372
      %v376 = vxor.u32 %v375, 2147483648
      %v377 = vsel %vm294, %v376, %v375
      %v378 = vsub.s32 4, %v354
      %v379 = vsel %vm294, %v378, %v354
      %v380 = vsel %vm293, %v82, %v377
      %v381 = vsel %vm293, 0, %v379
      %v382 = vcosq.f32.pop %v380
      %v383 = vsinq.f32.pop %v380
      %vm384 = vweird.f32 %v82
      %v385 = vadd.s32 %v381, 3
      %v386 = vand.u32 %v385, 3
      %vm387 = vcmp.lt.s32.totalorder %v386, 2
      %vm388 = vcmp.eq.s32.totalorder %v386, 0
      %v389 = vxor.u32 %v383, 2147483648
      %v390 = vsel %vm388, %v382, %v389
      %vm391 = vcmp.eq.s32.totalorder %v386, 2
      %v392 = vxor.u32 %v382, 2147483648
      %v393 = vsel %vm391, %v392, %v383
      %v394 = vsel %vm387, %v390, %v393
      %v395 = vsel %vm384, nan, %v394
      %v396 = vand.u32 2147483647, %v83
      %vm397 = vcmp.le.f32.partialorder %v396, 0.7853982
      %vm398 = vcmp.lt.s32.totalorder %v83, 0
      %v399 = vand.u32 %v83, 2139095040
      %v400 = vshrl.u32 %v399, 23
      %v401 = vsub.s32 %v400, 127
      %v402 = vand.u32 2147483647, %v83
      %v403 = vand.u32 %v402, 8388607
      %v404 = vor.u32 %v403, 8388608
      %v405 = vsub.s32 0, %v404
      %v406 = vadd.s32 %v401, 1
      %vm407 = vcmp.gt.s32.totalorder %v406, 0
      %v408 = vsel %vm407, %v406, 0
      %v409 = vshrl.u32 %v408, 5
      %v410 = vand.u32 %v408, 31
      %v411 = vsub.s32 32, %v410
      %v412 = vshrl.u32 683565275, %v411
      %v413 = vshll.u32 683565275, %v410
      %v414 = vshrl.u32 2475754826, %v411
      %v415 = vor.u32 %v413, %v414
      %v416 = vshll.u32 2475754826, %v410
      %v417 = vshrl.u32 2131351028, %v411
      %v418 = vor.u32 %v416, %v417
      %v419 = vshll.u32 2131351028, %v410
      %v420 = vshrl.u32 2102212464, %v411
      %v421 = vor.u32 %v419, %v420
      %v422 = vshll.u32 2102212464, %v410
      %v423 = vshrl.u32 920167782, %v411
      %v424 = vor.u32 %v422, %v423
      %v425 = vshll.u32 920167782, %v410
      %v426 = vshrl.u32 1326507024, %v411
      %v427 = vor.u32 %v425, %v426
      %vm428 = vcmp.lt.s32.totalorder %v409, 1
      %vm429 = vcmp.lt.s32.totalorder %v409, 2
      %vm430 = vcmp.lt.s32.totalorder %v409, 3
      %vm431 = vcmp.lt.s32.totalorder %v409, 4
      %v432 = vsel %vm428, %v412, %v415
      %v433 = vsel %vm431, %v421, 2102212464
      %v434 = vsel %vm430, %v418, %v433
      %v435 = vsel %vm429, %v432, %v434
      %v436 = vsel %vm428, %v415, %v418
      %v437 = vsel %vm431, %v424, 920167782
      %v438 = vsel %vm430, %v421, %v437
      %v439 = vsel %vm429, %v436, %v438
      %v440 = vsel %vm428, %v418, %v421
      %v441 = vsel %vm431, %v427, 1326507024
      %v442 = vsel %vm430, %v424, %v441
      %v443 = vsel %vm429, %v440, %v442
      %v444 = vshll.u32 %v404, 8
      %v445 = vmul.u32.u64.compose %v444, %v443
      %v446 = vextract.low.u32 %v445
      %v447 = vextract.high.u32 %v445
      %v448 = vmul.u32.u64.compose %v444, %v439
      %v449 = vextract.low.u32 %v448
      %v450 = vextract.high.u32 %v448
      %v451 = vmul.u32 %v444, %v435
      %v452 = vadd.s32 %v447, %v449
      %vm453 = vc.u32 %v447, %v449
      %v454 = vadd.s32 %v450, 1
      %v455 = vsel %vm453, %v454, %v450
      %v456 = vadd.s32 %v451, %v455
      %v457 = vadd.s32 %v456, 536870912
      %v458 = vshrl.u32 %v457, 30
      %v459 = vshll.u32 %v458, 30
      %v460 = vsub.s32 %v456, %v459
      %vm461 = vcmp.lt.s32.totalorder %v460, 0
      %v462 = vsub.s32 0, %v460
      %v463 = vsel %vm461, %v462, %v460
      %v464 = vclz %v463
      %v465 = vsub.s32 %v464, 2
      %vm466 = vcmp.gt.s32.totalorder 0, %v465
      %v467 = vsel %vm466, 0, %v465
      %v468 = vsub.s32 32, %v467
      %v469 = vshll.u32 %v460, %v467
      %v470 = vshrl.u32 %v452, %v468
      %v471 = vor.u32 %v469, %v470
      %v472 = vsub.s32 4294967266, %v467
      %v473 = vadd.s32 %v472, 127
      %v474 = vshll.u32 %v473, 23
      %v475 = vor.u32 4788187, %v474
      %v476 = vand.u32 2147483647, %v475
      %v478 = vcvt.s32.f32 %v471
      %v479 = vmul.f32 %v478, %v476
      %v480 = vxor.u32 %v479, 2147483648
      %v481 = vsel %vm398, %v480, %v479
      %v482 = vsub.s32 4, %v458
      %v483 = vsel %vm398, %v482, %v458
      %v484 = vsel %vm397, %v83, %v481
      %v485 = vsel %vm397, 0, %v483
      %v486 = vcosq.f32.pop %v484
      %v487 = vsinq.f32.pop %v484
      %vm488 = vweird.f32 %v83
      %v489 = vadd.s32 %v485, 3
      %v490 = vand.u32 %v489, 3
      %vm491 = vcmp.lt.s32.totalorder %v490, 2
      %vm492 = vcmp.eq.s32.totalorder %v490, 0
      %v493 = vxor.u32 %v487, 2147483648
      %v494 = vsel %vm492, %v486, %v493
      %vm495 = vcmp.eq.s32.totalorder %v490, 2
      %v496 = vxor.u32 %v486, 2147483648
      %v497 = vsel %vm495, %v496, %v487
      %v498 = vsel %vm491, %v494, %v497
      %v499 = vsel %vm488, nan, %v498
      %v500 = vand.u32 2147483647, %v80
      %vm501 = vcmp.le.f32.partialorder %v500, 0.7853982
      %vm502 = vcmp.lt.s32.totalorder %v80, 0
      %v503 = vand.u32 %v80, 2139095040
      %v504 = vshrl.u32 %v503, 23
      %v505 = vsub.s32 %v504, 127
      %v506 = vand.u32 2147483647, %v80
      %v507 = vand.u32 %v506, 8388607
      %v508 = vor.u32 %v507, 8388608
      %v509 = vsub.s32 0, %v508
      %v510 = vadd.s32 %v505, 1
      %vm511 = vcmp.gt.s32.totalorder %v510, 0
      %v512 = vsel %vm511, %v510, 0
      %v513 = vshrl.u32 %v512, 5
      %v514 = vand.u32 %v512, 31
      %v515 = vsub.s32 32, %v514
      %v516 = vshrl.u32 683565275, %v515
      %v517 = vshll.u32 683565275, %v514
      %v518 = vshrl.u32 2475754826, %v515
      %v519 = vor.u32 %v517, %v518
      %v520 = vshll.u32 2475754826, %v514
      %v521 = vshrl.u32 2131351028, %v515
      %v522 = vor.u32 %v520, %v521
      %v523 = vshll.u32 2131351028, %v514
      %v524 = vshrl.u32 2102212464, %v515
      %v525 = vor.u32 %v523, %v524
      %v526 = vshll.u32 2102212464, %v514
      %v527 = vshrl.u32 920167782, %v515
      %v528 = vor.u32 %v526, %v527
      %v529 = vshll.u32 920167782, %v514
      %v530 = vshrl.u32 1326507024, %v515
      %v531 = vor.u32 %v529, %v530
      %vm532 = vcmp.lt.s32.totalorder %v513, 1
      %vm533 = vcmp.lt.s32.totalorder %v513, 2
      %vm534 = vcmp.lt.s32.totalorder %v513, 3
      %vm535 = vcmp.lt.s32.totalorder %v513, 4
      %v536 = vsel %vm532, %v516, %v519
      %v537 = vsel %vm535, %v525, 2102212464
      %v538 = vsel %vm534, %v522, %v537
      %v539 = vsel %vm533, %v536, %v538
      %v540 = vsel %vm532, %v519, %v522
      %v541 = vsel %vm535, %v528, 920167782
      %v542 = vsel %vm534, %v525, %v541
      %v543 = vsel %vm533, %v540, %v542
      %v544 = vsel %vm532, %v522, %v525
      %v545 = vsel %vm535, %v531, 1326507024
      %v546 = vsel %vm534, %v528, %v545
      %v547 = vsel %vm533, %v544, %v546
      %v548 = vshll.u32 %v508, 8
      %v549 = vmul.u32.u64.compose %v548, %v547
      %v550 = vextract.low.u32 %v549
      %v551 = vextract.high.u32 %v549
      %v552 = vmul.u32.u64.compose %v548, %v543
      %v553 = vextract.low.u32 %v552
      %v554 = vextract.high.u32 %v552
      %v555 = vmul.u32 %v548, %v539
      %v556 = vadd.s32 %v551, %v553
      %vm557 = vc.u32 %v551, %v553
      %v558 = vadd.s32 %v554, 1
      %v559 = vsel %vm557, %v558, %v554
      %v560 = vadd.s32 %v555, %v559
      %v561 = vadd.s32 %v560, 536870912
      %v562 = vshrl.u32 %v561, 30
      %v563 = vshll.u32 %v562, 30
      %v564 = vsub.s32 %v560, %v563
      %vm565 = vcmp.lt.s32.totalorder %v564, 0
      %v566 = vsub.s32 0, %v564
      %v567 = vsel %vm565, %v566, %v564
      %v568 = vclz %v567
      %v569 = vsub.s32 %v568, 2
      %vm570 = vcmp.gt.s32.totalorder 0, %v569
      %v571 = vsel %vm570, 0, %v569
      %v572 = vsub.s32 32, %v571
      %v573 = vshll.u32 %v564, %v571
      %v574 = vshrl.u32 %v556, %v572
      %v575 = vor.u32 %v573, %v574
      %v576 = vsub.s32 4294967266, %v571
      %v577 = vadd.s32 %v576, 127
      %v578 = vshll.u32 %v577, 23
      %v579 = vor.u32 4788187, %v578
      %v580 = vand.u32 2147483647, %v579
      %v582 = vcvt.s32.f32 %v575
      %v583 = vmul.f32 %v582, %v580
      %v584 = vxor.u32 %v583, 2147483648
      %v585 = vsel %vm502, %v584, %v583
      %v586 = vsub.s32 4, %v562
      %v587 = vsel %vm502, %v586, %v562
      %v588 = vsel %vm501, %v80, %v585
      %v589 = vsel %vm501, 0, %v587
      %v590 = vcosq.f32.pop %v588
      %v591 = vsinq.f32.pop %v588
      %vm592 = vweird.f32 %v80
      %v593 = vand.u32 %v589, 3
      %vm594 = vcmp.lt.s32.totalorder %v593, 2
      %vm595 = vcmp.eq.s32.totalorder %v593, 0
      %v596 = vxor.u32 %v591, 2147483648
      %v597 = vsel %vm595, %v590, %v596
      %vm598 = vcmp.eq.s32.totalorder %v593, 2
      %v599 = vxor.u32 %v590, 2147483648
      %v600 = vsel %vm598, %v599, %v591
      %v601 = vsel %vm594, %v597, %v600
      %v602 = vsel %vm592, nan, %v601
      %v603 = vand.u32 2147483647, %v81
      %vm604 = vcmp.le.f32.partialorder %v603, 0.7853982
      %vm605 = vcmp.lt.s32.totalorder %v81, 0
      %v606 = vand.u32 %v81, 2139095040
      %v607 = vshrl.u32 %v606, 23
      %v608 = vsub.s32 %v607, 127
      %v609 = vand.u32 2147483647, %v81
      %v610 = vand.u32 %v609, 8388607
      %v611 = vor.u32 %v610, 8388608
      %v612 = vsub.s32 0, %v611
      %v613 = vadd.s32 %v608, 1
      %vm614 = vcmp.gt.s32.totalorder %v613, 0
      %v615 = vsel %vm614, %v613, 0
      %v616 = vshrl.u32 %v615, 5
      %v617 = vand.u32 %v615, 31
      %v618 = vsub.s32 32, %v617
      %v619 = vshrl.u32 683565275, %v618
      %v620 = vshll.u32 683565275, %v617
      %v621 = vshrl.u32 2475754826, %v618
      %v622 = vor.u32 %v620, %v621
      %v623 = vshll.u32 2475754826, %v617
      %v624 = vshrl.u32 2131351028, %v618
      %v625 = vor.u32 %v623, %v624
      %v626 = vshll.u32 2131351028, %v617
      %v627 = vshrl.u32 2102212464, %v618
      %v628 = vor.u32 %v626, %v627
      %v629 = vshll.u32 2102212464, %v617
      %v630 = vshrl.u32 920167782, %v618
      %v631 = vor.u32 %v629, %v630
      %v632 = vshll.u32 920167782, %v617
      %v633 = vshrl.u32 1326507024, %v618
      %v634 = vor.u32 %v632, %v633
      %vm635 = vcmp.lt.s32.totalorder %v616, 1
      %vm636 = vcmp.lt.s32.totalorder %v616, 2
      %vm637 = vcmp.lt.s32.totalorder %v616, 3
      %vm638 = vcmp.lt.s32.totalorder %v616, 4
      %v639 = vsel %vm635, %v619, %v622
      %v640 = vsel %vm638, %v628, 2102212464
      %v641 = vsel %vm637, %v625, %v640
      %v642 = vsel %vm636, %v639, %v641
      %v643 = vsel %vm635, %v622, %v625
      %v644 = vsel %vm638, %v631, 920167782
      %v645 = vsel %vm637, %v628, %v644
      %v646 = vsel %vm636, %v643, %v645
      %v647 = vsel %vm635, %v625, %v628
      %v648 = vsel %vm638, %v634, 1326507024
      %v649 = vsel %vm637, %v631, %v648
      %v650 = vsel %vm636, %v647, %v649
      %v651 = vshll.u32 %v611, 8
      %v652 = vmul.u32.u64.compose %v651, %v650
      %v653 = vextract.low.u32 %v652
      %v654 = vextract.high.u32 %v652
      %v655 = vmul.u32.u64.compose %v651, %v646
      %v656 = vextract.low.u32 %v655
      %v657 = vextract.high.u32 %v655
      %v658 = vmul.u32 %v651, %v642
      %v659 = vadd.s32 %v654, %v656
      %vm660 = vc.u32 %v654, %v656
      %v661 = vadd.s32 %v657, 1
      %v662 = vsel %vm660, %v661, %v657
      %v663 = vadd.s32 %v658, %v662
      %v664 = vadd.s32 %v663, 536870912
      %v665 = vshrl.u32 %v664, 30
      %v666 = vshll.u32 %v665, 30
      %v667 = vsub.s32 %v663, %v666
      %vm668 = vcmp.lt.s32.totalorder %v667, 0
      %v669 = vsub.s32 0, %v667
      %v670 = vsel %vm668, %v669, %v667
      %v671 = vclz %v670
      %v672 = vsub.s32 %v671, 2
      %vm673 = vcmp.gt.s32.totalorder 0, %v672
      %v674 = vsel %vm673, 0, %v672
      %v675 = vsub.s32 32, %v674
      %v676 = vshll.u32 %v667, %v674
      %v677 = vshrl.u32 %v659, %v675
      %v678 = vor.u32 %v676, %v677
      %v679 = vsub.s32 4294967266, %v674
      %v680 = vadd.s32 %v679, 127
      %v681 = vshll.u32 %v680, 23
      %v682 = vor.u32 4788187, %v681
      %v683 = vand.u32 2147483647, %v682
      %v685 = vcvt.s32.f32 %v678
      %v686 = vmul.f32 %v685, %v683
      %v687 = vxor.u32 %v686, 2147483648
      %v688 = vsel %vm605, %v687, %v686
      %v689 = vsub.s32 4, %v665
      %v690 = vsel %vm605, %v689, %v665
      %v691 = vsel %vm604, %v81, %v688
      %v692 = vsel %vm604, 0, %v690
      %v693 = vcosq.f32.pop %v691
      %v694 = vsinq.f32.pop %v691
      %vm695 = vweird.f32 %v81
      %v696 = vand.u32 %v692, 3
      %vm697 = vcmp.lt.s32.totalorder %v696, 2
      %vm698 = vcmp.eq.s32.totalorder %v696, 0
      %v699 = vxor.u32 %v694, 2147483648
      %v700 = vsel %vm698, %v693, %v699
      %vm701 = vcmp.eq.s32.totalorder %v696, 2
      %v702 = vxor.u32 %v693, 2147483648
      %v703 = vsel %vm701, %v702, %v694
      %v704 = vsel %vm697, %v700, %v703
      %v705 = vsel %vm695, nan, %v704
      %v706 = vand.u32 2147483647, %v82
      %vm707 = vcmp.le.f32.partialorder %v706, 0.7853982
      %vm708 = vcmp.lt.s32.totalorder %v82, 0
      %v709 = vand.u32 %v82, 2139095040
      %v710 = vshrl.u32 %v709, 23
      %v711 = vsub.s32 %v710, 127
      %v712 = vand.u32 2147483647, %v82
      %v713 = vand.u32 %v712, 8388607
      %v714 = vor.u32 %v713, 8388608
      %v715 = vsub.s32 0, %v714
      %v716 = vadd.s32 %v711, 1
      %vm717 = vcmp.gt.s32.totalorder %v716, 0
      %v718 = vsel %vm717, %v716, 0
      %v719 = vshrl.u32 %v718, 5
      %v720 = vand.u32 %v718, 31
      %v721 = vsub.s32 32, %v720
      %v722 = vshrl.u32 683565275, %v721
      %v723 = vshll.u32 683565275, %v720
      %v724 = vshrl.u32 2475754826, %v721
      %v725 = vor.u32 %v723, %v724
      %v726 = vshll.u32 2475754826, %v720
      %v727 = vshrl.u32 2131351028, %v721
      %v728 = vor.u32 %v726, %v727
      %v729 = vshll.u32 2131351028, %v720
      %v730 = vshrl.u32 2102212464, %v721
      %v731 = vor.u32 %v729, %v730
      %v732 = vshll.u32 2102212464, %v720
      %v733 = vshrl.u32 920167782, %v721
      %v734 = vor.u32 %v732, %v733
      %v735 = vshll.u32 920167782, %v720
      %v736 = vshrl.u32 1326507024, %v721
      %v737 = vor.u32 %v735, %v736
      %vm738 = vcmp.lt.s32.totalorder %v719, 1
      %vm739 = vcmp.lt.s32.totalorder %v719, 2
      %vm740 = vcmp.lt.s32.totalorder %v719, 3
      %vm741 = vcmp.lt.s32.totalorder %v719, 4
      %v742 = vsel %vm738, %v722, %v725
      %v743 = vsel %vm741, %v731, 2102212464
      %v744 = vsel %vm740, %v728, %v743
      %v745 = vsel %vm739, %v742, %v744
      %v746 = vsel %vm738, %v725, %v728
      %v747 = vsel %vm741, %v734, 920167782
      %v748 = vsel %vm740, %v731, %v747
      %v749 = vsel %vm739, %v746, %v748
      %v750 = vsel %vm738, %v728, %v731
      %v751 = vsel %vm741, %v737, 1326507024
      %v752 = vsel %vm740, %v734, %v751
      %v753 = vsel %vm739, %v750, %v752
      %v754 = vshll.u32 %v714, 8
      %v755 = vmul.u32.u64.compose %v754, %v753
      %v756 = vextract.low.u32 %v755
      %v757 = vextract.high.u32 %v755
      %v758 = vmul.u32.u64.compose %v754, %v749
      %v759 = vextract.low.u32 %v758
      %v760 = vextract.high.u32 %v758
      %v761 = vmul.u32 %v754, %v745
      %v762 = vadd.s32 %v757, %v759
      %vm763 = vc.u32 %v757, %v759
      %v764 = vadd.s32 %v760, 1
      %v765 = vsel %vm763, %v764, %v760
      %v766 = vadd.s32 %v761, %v765
      %v767 = vadd.s32 %v766, 536870912
      %v768 = vshrl.u32 %v767, 30
      %v769 = vshll.u32 %v768, 30
      %v770 = vsub.s32 %v766, %v769
      %vm771 = vcmp.lt.s32.totalorder %v770, 0
      %v772 = vsub.s32 0, %v770
      %v773 = vsel %vm771, %v772, %v770
      %v774 = vclz %v773
      %v775 = vsub.s32 %v774, 2
      %vm776 = vcmp.gt.s32.totalorder 0, %v775
      %v777 = vsel %vm776, 0, %v775
      %v778 = vsub.s32 32, %v777
      %v779 = vshll.u32 %v770, %v777
      %v780 = vshrl.u32 %v762, %v778
      %v781 = vor.u32 %v779, %v780
      %v782 = vsub.s32 4294967266, %v777
      %v783 = vadd.s32 %v782, 127
      %v784 = vshll.u32 %v783, 23
      %v785 = vor.u32 4788187, %v784
      %v786 = vand.u32 2147483647, %v785
      %v788 = vcvt.s32.f32 %v781
      %v789 = vmul.f32 %v788, %v786
      %v790 = vxor.u32 %v789, 2147483648
      %v791 = vsel %vm708, %v790, %v789
      %v792 = vsub.s32 4, %v768
      %v793 = vsel %vm708, %v792, %v768
      %v794 = vsel %vm707, %v82, %v791
      %v795 = vsel %vm707, 0, %v793
      %v796 = vcosq.f32.pop %v794
      %v797 = vsinq.f32.pop %v794
      %vm798 = vweird.f32 %v82
      %v799 = vand.u32 %v795, 3
      %vm800 = vcmp.lt.s32.totalorder %v799, 2
      %vm801 = vcmp.eq.s32.totalorder %v799, 0
      %v802 = vxor.u32 %v797, 2147483648
      %v803 = vsel %vm801, %v796, %v802
      %vm804 = vcmp.eq.s32.totalorder %v799, 2
      %v805 = vxor.u32 %v796, 2147483648
      %v806 = vsel %vm804, %v805, %v797
      %v807 = vsel %vm800, %v803, %v806
      %v808 = vsel %vm798, nan, %v807
      %v809 = vand.u32 2147483647, %v83
      %vm810 = vcmp.le.f32.partialorder %v809, 0.7853982
      %vm811 = vcmp.lt.s32.totalorder %v83, 0
      %v812 = vand.u32 %v83, 2139095040
      %v813 = vshrl.u32 %v812, 23
      %v814 = vsub.s32 %v813, 127
      %v815 = vand.u32 2147483647, %v83
      %v816 = vand.u32 %v815, 8388607
      %v817 = vor.u32 %v816, 8388608
      %v818 = vsub.s32 0, %v817
      %v819 = vadd.s32 %v814, 1
      %vm820 = vcmp.gt.s32.totalorder %v819, 0
      %v821 = vsel %vm820, %v819, 0
      %v822 = vshrl.u32 %v821, 5
      %v823 = vand.u32 %v821, 31
      %v824 = vsub.s32 32, %v823
      %v825 = vshrl.u32 683565275, %v824
      %v826 = vshll.u32 683565275, %v823
      %v827 = vshrl.u32 2475754826, %v824
      %v828 = vor.u32 %v826, %v827
      %v829 = vshll.u32 2475754826, %v823
      %v830 = vshrl.u32 2131351028, %v824
      %v831 = vor.u32 %v829, %v830
      %v832 = vshll.u32 2131351028, %v823
      %v833 = vshrl.u32 2102212464, %v824
      %v834 = vor.u32 %v832, %v833
      %v835 = vshll.u32 2102212464, %v823
      %v836 = vshrl.u32 920167782, %v824
      %v837 = vor.u32 %v835, %v836
      %v838 = vshll.u32 920167782, %v823
      %v839 = vshrl.u32 1326507024, %v824
      %v840 = vor.u32 %v838, %v839
      %vm841 = vcmp.lt.s32.totalorder %v822, 1
      %vm842 = vcmp.lt.s32.totalorder %v822, 2
      %vm843 = vcmp.lt.s32.totalorder %v822, 3
      %vm844 = vcmp.lt.s32.totalorder %v822, 4
      %v845 = vsel %vm841, %v825, %v828
      %v846 = vsel %vm844, %v834, 2102212464
      %v847 = vsel %vm843, %v831, %v846
      %v848 = vsel %vm842, %v845, %v847
      %v849 = vsel %vm841, %v828, %v831
      %v850 = vsel %vm844, %v837, 920167782
      %v851 = vsel %vm843, %v834, %v850
      %v852 = vsel %vm842, %v849, %v851
      %v853 = vsel %vm841, %v831, %v834
      %v854 = vsel %vm844, %v840, 1326507024
      %v855 = vsel %vm843, %v837, %v854
      %v856 = vsel %vm842, %v853, %v855
      %v857 = vshll.u32 %v817, 8
      %v858 = vmul.u32.u64.compose %v857, %v856
      %v859 = vextract.low.u32 %v858
      %v860 = vextract.high.u32 %v858
      %v861 = vmul.u32.u64.compose %v857, %v852
      %v862 = vextract.low.u32 %v861
      %v863 = vextract.high.u32 %v861
      %v864 = vmul.u32 %v857, %v848
      %v865 = vadd.s32 %v860, %v862
      %vm866 = vc.u32 %v860, %v862
      %v867 = vadd.s32 %v863, 1
      %v868 = vsel %vm866, %v867, %v863
      %v869 = vadd.s32 %v864, %v868
      %v870 = vadd.s32 %v869, 536870912
      %v871 = vshrl.u32 %v870, 30
      %v872 = vshll.u32 %v871, 30
      %v873 = vsub.s32 %v869, %v872
      %vm874 = vcmp.lt.s32.totalorder %v873, 0
      %v875 = vsub.s32 0, %v873
      %v876 = vsel %vm874, %v875, %v873
      %v877 = vclz %v876
      %v878 = vsub.s32 %v877, 2
      %vm879 = vcmp.gt.s32.totalorder 0, %v878
      %v880 = vsel %vm879, 0, %v878
      %v881 = vsub.s32 32, %v880
      %v882 = vshll.u32 %v873, %v880
      %v883 = vshrl.u32 %v865, %v881
      %v884 = vor.u32 %v882, %v883
      %v885 = vsub.s32 4294967266, %v880
      %v886 = vadd.s32 %v885, 127
      %v887 = vshll.u32 %v886, 23
      %v888 = vor.u32 4788187, %v887
      %v889 = vand.u32 2147483647, %v888
      %v891 = vcvt.s32.f32 %v884
      %v892 = vmul.f32 %v891, %v889
      %v893 = vxor.u32 %v892, 2147483648
      %v894 = vsel %vm811, %v893, %v892
      %v895 = vsub.s32 4, %v871
      %v896 = vsel %vm811, %v895, %v871
      %v897 = vsel %vm810, %v83, %v894
      %v898 = vsel %vm810, 0, %v896
      %v899 = vcosq.f32.pop %v897
      %v900 = vsinq.f32.pop %v897
      %vm901 = vweird.f32 %v83
      %v902 = vand.u32 %v898, 3
      %vm903 = vcmp.lt.s32.totalorder %v902, 2
      %vm904 = vcmp.eq.s32.totalorder %v902, 0
      %v905 = vxor.u32 %v900, 2147483648
      %v906 = vsel %vm904, %v899, %v905
      %vm907 = vcmp.eq.s32.totalorder %v902, 2
      %v908 = vxor.u32 %v899, 2147483648
      %v909 = vsel %vm907, %v908, %v900
      %v910 = vsel %vm903, %v906, %v909
      %v911 = vsel %vm901, nan, %v910
      %v912 = vmul.f32 %v187, 2.0
      %v913 = vmul.f32 %v291, 2.0
      %v914 = vmul.f32 %v912, %v602
      %v915 = vmul.f32 %v913, %v705
      %v916 = vmul.f32 %v912, %v187
      %v917 = vmul.f32 %v913, %v291
      %v918 = vsub.f32 1.0, %v916
      %v919 = vsub.f32 1.0, %v917
      %v920 = vlaneseq
      %v921 = vshrl.u32 %v920, 7
      %v922 = vsub.s32 4, %v921
      %v923 = vrot.slane %v918, %v922
      %v924 = vlaneseq
      %v925 = vshrl.u32 %v924, 7
      %v926 = vsub.s32 4, %v925
      %v927 = vrot.slane %v919, %v926
      %v928 = vmul.f32 %v187, %v923
      %v929 = vmul.f32 %v291, %v927
      %v930 = vlaneseq
      %v931 = vshrl.u32 %v930, 7
      %v932 = vsub.s32 4, %v931
      %v933 = vrot.slane %v914, %v932
      %v934 = vlaneseq
      %v935 = vshrl.u32 %v934, 7
      %v936 = vsub.s32 4, %v935
      %v937 = vrot.slane %v915, %v936
      %v938 = vmul.f32 %v602, %v933
      %v939 = vmul.f32 %v705, %v937
      %v940 = vadd.f32 %v928, %v938
      %v941 = vadd.f32 %v929, %v939
      %v942 = vmul.f32 %v602, %v923
      %v943 = vmul.f32 %v705, %v927
      %v944 = vmul.f32 %v187, %v933
      %v945 = vmul.f32 %v291, %v937
      %v946 = vsub.f32 %v942, %v944
      %v947 = vsub.f32 %v943, %v945
      %v948 = vmul.f32 %v914, %v918
      %v949 = vmul.f32 %v915, %v919
      %v950 = vadd.f32 %v948, %v948
      %v951 = vadd.f32 %v949, %v949
      %v952 = vmul.f32 %v918, %v918
      %v953 = vmul.f32 %v919, %v919
      %v954 = vmul.f32 %v914, %v914
      %v955 = vmul.f32 %v915, %v915
      %v956 = vsub.f32 %v952, %v954
      %v957 = vsub.f32 %v953, %v955
      %v958 = vlaneseq
      %v959 = vshrl.u32 %v958, 7
      %v960 = vsub.s32 4, %v959
      %v961 = vrot.slane %v956, %v960
      %v962 = vlaneseq
      %v963 = vshrl.u32 %v962, 7
      %v964 = vsub.s32 4, %v963
      %v965 = vrot.slane %v957, %v964
      %v966 = vmul.f32 %v187, %v961
      %v967 = vmul.f32 %v291, %v965
      %v968 = vlaneseq
      %v969 = vshrl.u32 %v968, 7
      %v970 = vsub.s32 4, %v969
      %v971 = vrot.slane %v950, %v970
      %v972 = vlaneseq
      %v973 = vshrl.u32 %v972, 7
      %v974 = vsub.s32 4, %v973
      %v975 = vrot.slane %v951, %v974
      %v976 = vmul.f32 %v602, %v971
      %v977 = vmul.f32 %v705, %v975
      %v978 = vadd.f32 %v966, %v976
      %v979 = vadd.f32 %v967, %v977
      %v980 = vmul.f32 %v602, %v961
      %v981 = vmul.f32 %v705, %v965
      %v982 = vmul.f32 %v187, %v971
      %v983 = vmul.f32 %v291, %v975
      %v984 = vsub.f32 %v980, %v982
      %v985 = vsub.f32 %v981, %v983
      %v986 = vmul.f32 %v395, 2.0
      %v987 = vmul.f32 %v499, 2.0
      %v988 = vmul.f32 %v986, %v808
      %v989 = vmul.f32 %v987, %v911
      %v990 = vmul.f32 %v986, %v395
      %v991 = vmul.f32 %v987, %v499
      %v992 = vsub.f32 1.0, %v990
      %v993 = vsub.f32 1.0, %v991
      %v994 = vlaneseq
      %v995 = vshrl.u32 %v994, 7
      %v996 = vsub.s32 4, %v995
      %v997 = vrot.slane %v992, %v996
      %v998 = vlaneseq
      %v999 = vshrl.u32 %v998, 7
      %v1000 = vsub.s32 4, %v999
      %v1001 = vrot.slane %v993, %v1000
      %v1002 = vmul.f32 %v395, %v997
      %v1003 = vmul.f32 %v499, %v1001
      %v1004 = vlaneseq
      %v1005 = vshrl.u32 %v1004, 7
      %v1006 = vsub.s32 4, %v1005
      %v1007 = vrot.slane %v988, %v1006
      %v1008 = vlaneseq
      %v1009 = vshrl.u32 %v1008, 7
      %v1010 = vsub.s32 4, %v1009
      %v1011 = vrot.slane %v989, %v1010
      %v1012 = vmul.f32 %v808, %v1007
      %v1013 = vmul.f32 %v911, %v1011
      %v1014 = vadd.f32 %v1002, %v1012
      %v1015 = vadd.f32 %v1003, %v1013
      %v1016 = vmul.f32 %v808, %v997
      %v1017 = vmul.f32 %v911, %v1001
      %v1018 = vmul.f32 %v395, %v1007
      %v1019 = vmul.f32 %v499, %v1011
      %v1020 = vsub.f32 %v1016, %v1018
      %v1021 = vsub.f32 %v1017, %v1019
      %s1022 = smul.u32 %s68, 16
      %s1023 = scalar_lea.vmem [#allocation4], %s1022
      %v1024 = vld [vmem:[%s1023] sm:$0xff]
      %v1025 = vld [vmem:[%s1023 + $0x8] sm:$0xff]
      %v1026 = vmul.f32 %v1024, %v61
      %v1027 = vmul.f32 %v1025, %v62
      %vm1028 = vcmask 195584
      %v1030 = vsel %vm1028, %v1026, 0
      %v1033 = vsel %vm1028, %v1027, 0
      %1035 = vmatprep.subr.mxu0 0.0
      %1036 = vmatpush1.msra.mxu0 0.0
      %1037 = vmatprep.subr.mxu0 0.0
      %1038 = vmatpush1.msra.mxu0 0.0
      %1039 = vmatprep.subr.mxu0 0.0
      %1040 = vmatpush1.msra.mxu0 0.0
      %1041 = vmatprep.subr.mxu0 0.0
      %1042 = vmatpush1.msra.mxu0 0.0
      %1043 = vmatprep.subr.mxu0 0.0
      %1044 = vmatpush1.msra.mxu0 0.0
      %1045 = vmatprep.subr.mxu0 0.0
      %1046 = vmatpush1.msra.mxu0 0.0
      %1047 = vmatprep.subr.mxu0 0.0
      %1048 = vmatpush1.msra.mxu0 0.0
      %1049 = vmatprep.subr.mxu0 0.0
      %1050 = vmatpush1.msra.mxu0 0.0
      %1051 = vmatprep.subr.mxu0 0.0
      %1052 = vmatpush1.msra.mxu0 0.0
      %1053 = vmatprep.subr.mxu0 0.0
      %1054 = vmatpush1.msra.mxu0 0.0
      %1055 = vmatprep.subr.mxu0 0.0
      %1056 = vmatpush1.msra.mxu0 0.0
      %1057 = vmatprep.subr.mxu0 0.0
      %1058 = vmatpush1.msra.mxu0 0.0
      %1059 = vmatprep.subr.mxu0 0.0
      %1060 = vmatpush1.msra.mxu0 0.0
      %1061 = vmatprep.subr.mxu0 %v979
      %1062 = vmatpush1.msra.mxu0 %v978
      %1063 = vmatprep.subr.mxu0 %v941
      %1064 = vmatpush1.msra.mxu0 %v940
      %1065 = vmatprep.subr.mxu0 %v291
      %1066 = vmatpush1.msra.mxu0 %v187
      %1067 = vmatprep.subr.mxu0 0.0
      %1068 = vmatpush2.msra.mxu0 0.0
      %1069 = vmatprep.subr.mxu0 0.0
      %1070 = vmatpush2.msra.mxu0 0.0
      %1071 = vmatprep.subr.mxu0 0.0
      %1072 = vmatpush2.msra.mxu0 0.0
      %1073 = vmatprep.subr.mxu0 0.0
      %1074 = vmatpush2.msra.mxu0 0.0
      %1075 = vmatprep.subr.mxu0 0.0
      %1076 = vmatpush2.msra.mxu0 0.0
      %1077 = vmatprep.subr.mxu0 0.0
      %1078 = vmatpush2.msra.mxu0 0.0
      %1079 = vmatprep.subr.mxu0 0.0
      %1080 = vmatpush2.msra.mxu0 0.0
      %1081 = vmatprep.subr.mxu0 0.0
      %1082 = vmatpush2.msra.mxu0 0.0
      %1083 = vmatprep.subr.mxu0 0.0
      %1084 = vmatpush2.msra.mxu0 0.0
      %1085 = vmatprep.subr.mxu0 0.0
      %1086 = vmatpush2.msra.mxu0 0.0
      %1087 = vmatprep.subr.mxu0 0.0
      %1088 = vmatpush2.msra.mxu0 0.0
      %1089 = vmatprep.subr.mxu0 0.0
      %1090 = vmatpush2.msra.mxu0 0.0
      %1091 = vmatprep.subr.mxu0 0.0
      %1092 = vmatpush2.msra.mxu0 0.0
      %1093 = vmatprep.subr.mxu0 0.0
      %1094 = vmatpush2.msra.mxu0 0.0
      %1095 = vmatprep.subr.mxu0 0.0
      %1096 = vmatpush2.msra.mxu0 0.0
      %1097 = vmatprep.subr.mxu0 0.0
      %1098 = vmatpush2.msra.mxu0 0.0
      %1099 = vmatprep.mubr.f32.mxu0 0.0
      %1100 = vmatmul.mubr.f32.gmra.mxu0 %v1030
      %v1101 = vpop.f32.mrf.mxu0
      %v1102 = vadd.f32 0.0, %v1101
      %v1103 = vpop.f32.mrf.mxu0
      %v1104 = vadd.f32 0.0, %v1103
      %1105 = vmatprep.mubr.f32.mxu0 0.0
      %1106 = vmatmul.mubr.f32.gmra.mxu0 %v1033
      %v1107 = vpop.f32.mrf.mxu0
      %v1108 = vadd.f32 0.0, %v1107
      %v1109 = vpop.f32.mrf.mxu0
      %v1110 = vadd.f32 0.0, %v1109
      %1111 = vdwg.mxu0
      %1112 = vmatprep.subr.mxu0 0.0
      %1113 = vmatpush1.msra.mxu0 0.0
      %1114 = vmatprep.subr.mxu0 0.0
      %1115 = vmatpush1.msra.mxu0 0.0
      %1116 = vmatprep.subr.mxu0 0.0
      %1117 = vmatpush1.msra.mxu0 0.0
      %1118 = vmatprep.subr.mxu0 0.0
      %1119 = vmatpush1.msra.mxu0 0.0
      %1120 = vmatprep.subr.mxu0 0.0
      %1121 = vmatpush1.msra.mxu0 0.0
      %1122 = vmatprep.subr.mxu0 0.0
      %1123 = vmatpush1.msra.mxu0 0.0
      %1124 = vmatprep.subr.mxu0 0.0
      %1125 = vmatpush1.msra.mxu0 0.0
      %1126 = vmatprep.subr.mxu0 0.0
      %1127 = vmatpush1.msra.mxu0 0.0
      %1128 = vmatprep.subr.mxu0 0.0
      %1129 = vmatpush1.msra.mxu0 0.0
      %1130 = vmatprep.subr.mxu0 0.0
      %1131 = vmatpush1.msra.mxu0 0.0
      %1132 = vmatprep.subr.mxu0 0.0
      %1133 = vmatpush1.msra.mxu0 0.0
      %1134 = vmatprep.subr.mxu0 0.0
      %1135 = vmatpush1.msra.mxu0 0.0
      %1136 = vmatprep.subr.mxu0 0.0
      %1137 = vmatpush1.msra.mxu0 0.0
      %1138 = vmatprep.subr.mxu0 %v985
      %1139 = vmatpush1.msra.mxu0 %v984
      %1140 = vmatprep.subr.mxu0 %v947
      %1141 = vmatpush1.msra.mxu0 %v946
      %1142 = vmatprep.subr.mxu0 %v705
      %1143 = vmatpush1.msra.mxu0 %v602
      %1144 = vmatprep.subr.mxu0 0.0
      %1145 = vmatpush2.msra.mxu0 0.0
      %1146 = vmatprep.subr.mxu0 0.0
      %1147 = vmatpush2.msra.mxu0 0.0
      %1148 = vmatprep.subr.mxu0 0.0
      %1149 = vmatpush2.msra.mxu0 0.0
      %1150 = vmatprep.subr.mxu0 0.0
      %1151 = vmatpush2.msra.mxu0 0.0
      %1152 = vmatprep.subr.mxu0 0.0
      %1153 = vmatpush2.msra.mxu0 0.0
      %1154 = vmatprep.subr.mxu0 0.0
      %1155 = vmatpush2.msra.mxu0 0.0
      %1156 = vmatprep.subr.mxu0 0.0
      %1157 = vmatpush2.msra.mxu0 0.0
      %1158 = vmatprep.subr.mxu0 0.0
      %1159 = vmatpush2.msra.mxu0 0.0
      %1160 = vmatprep.subr.mxu0 0.0
      %1161 = vmatpush2.msra.mxu0 0.0
      %1162 = vmatprep.subr.mxu0 0.0
      %1163 = vmatpush2.msra.mxu0 0.0
      %1164 = vmatprep.subr.mxu0 0.0
      %1165 = vmatpush2.msra.mxu0 0.0
      %1166 = vmatprep.subr.mxu0 0.0
      %1167 = vmatpush2.msra.mxu0 0.0
      %1168 = vmatprep.subr.mxu0 0.0
      %1169 = vmatpush2.msra.mxu0 0.0
      %1170 = vmatprep.subr.mxu0 0.0
      %1171 = vmatpush2.msra.mxu0 0.0
      %1172 = vmatprep.subr.mxu0 0.0
      %1173 = vmatpush2.msra.mxu0 0.0
      %1174 = vmatprep.subr.mxu0 0.0
      %1175 = vmatpush2.msra.mxu0 0.0
      %1176 = vmatprep.mubr.f32.mxu0 0.0
      %1177 = vmatmul.mubr.f32.gmra.mxu0 %v1030
      %v1178 = vpop.f32.mrf.mxu0
      %v1179 = vadd.f32 0.0, %v1178
      %v1180 = vpop.f32.mrf.mxu0
      %v1181 = vadd.f32 0.0, %v1180
      %1182 = vmatprep.mubr.f32.mxu0 0.0
      %1183 = vmatmul.mubr.f32.gmra.mxu0 %v1033
      %v1184 = vpop.f32.mrf.mxu0
      %v1185 = vadd.f32 0.0, %v1184
      %v1186 = vpop.f32.mrf.mxu0
      %v1187 = vadd.f32 0.0, %v1186
      %1188 = vdwg.mxu0
      %v1189 = vmul.f32 %v395, %v1179
      %v1190 = vmul.f32 %v499, %v1181
      %v1191 = vmul.f32 %v1014, %v1185
      %v1192 = vmul.f32 %v1015, %v1187
      %v1193 = vmul.f32 %v808, %v1102
      %v1194 = vmul.f32 %v911, %v1104
      %v1195 = vmul.f32 %v1020, %v1108
      %v1196 = vmul.f32 %v1021, %v1110
      %v1197 = vadd.f32 %v1189, %v1193
      %v1198 = vadd.f32 %v1190, %v1194
      %v1199 = vadd.f32 %v1191, %v1195
      %v1200 = vadd.f32 %v1192, %v1196
      %v1201 = vadd.f32 %v1197, %v1199
      %v1202 = vrot.slane %v1201, 4
      %v1203 = vadd.f32 %v1201, %v1202
      %v1204 = vrot.slane %v1203, 2
      %v1205 = vadd.f32 %v1203, %v1204
      %v1206 = vrot.slane %v1205, 1
      %v1207 = vadd.f32 %v1205, %v1206
      %v1208 = vadd.f32 %v1198, %v1200
      %v1209 = vrot.slane %v1208, 4
      %v1210 = vadd.f32 %v1208, %v1209
      %v1211 = vrot.slane %v1210, 2
      %v1212 = vadd.f32 %v1210, %v1211
      %v1213 = vrot.slane %v1212, 1
      %v1214 = vadd.f32 %v1212, %v1213
      %v1215 = vmul.f32 %v808, %v1179
      %v1216 = vmul.f32 %v911, %v1181
      %v1217 = vmul.f32 %v1020, %v1185
      %v1218 = vmul.f32 %v1021, %v1187
      %v1219 = vmul.f32 %v395, %v1102
      %v1220 = vmul.f32 %v499, %v1104
      %v1221 = vmul.f32 %v1014, %v1108
      %v1222 = vmul.f32 %v1015, %v1110
      %v1223 = vsub.f32 %v1215, %v1219
      %v1224 = vsub.f32 %v1216, %v1220
      %v1225 = vsub.f32 %v1217, %v1221
      %v1226 = vsub.f32 %v1218, %v1222
      %v1227 = vadd.f32 %v1223, %v1225
      %v1228 = vrot.slane %v1227, 4
      %v1229 = vadd.f32 %v1227, %v1228
      %v1230 = vrot.slane %v1229, 2
      %v1231 = vadd.f32 %v1229, %v1230
      %v1232 = vrot.slane %v1231, 1
      %v1233 = vadd.f32 %v1231, %v1232
      %v1234 = vadd.f32 %v1224, %v1226
      %v1235 = vrot.slane %v1234, 4
      %v1236 = vadd.f32 %v1234, %v1235
      %v1237 = vrot.slane %v1236, 2
      %v1238 = vadd.f32 %v1236, %v1237
      %v1239 = vrot.slane %v1238, 1
      %v1240 = vadd.f32 %v1238, %v1239
      %v1241 = vmul.f32 %v1207, %v1207
      %v1242 = vmul.f32 %v1214, %v1214
      %v1243 = vmul.f32 %v1233, %v1233
      %v1244 = vmul.f32 %v1240, %v1240
      %v1245 = vadd.f32 %v1241, %v1243
      %v1246 = vadd.f32 %v1242, %v1244
      %v1249 = vcombine.low %v1245, %v1246
      %v1251 = vunpack.c.l.s4 1966171168
      %v1252 = vunpack.c.0.s8 %v1251
      %v1253 = vlaneseq
      %v1254 = vshrl.u32 %v1253, 7
      %v1255 = vsub.s32 %v1252, %v1254
      %v1256 = vrot.slane %v1249, %v1255
      %v1258 = vunpack.c.l.s4 1966171168
      %v1259 = vunpack.c.0.s8 %v1258
      %v1260 = vlaneseq
      %v1261 = vshrl.u32 %v1260, 7
      %v1262 = vsub.s32 %v1259, %v1261
      %v1263 = vrot.slane %v1256, %v1262
      %v1265 = vlaneseq
      %vm1266 = vcmp.ge.s32.totalorder %v1265, 0
      %vm1267 = vcmp.lt.s32.totalorder %v1265, 256
      %vm1268 = vmand %vm1266, %vm1267
      %s1269 = sshra.s32 %s68, 3
      %s1270 = sand.u32 %s68, 7
      %s1271 = sshra.s32 %s68, 3
      %s1272 = sand.u32 %s68, 7
      %s1273 = smul.u32 %s1269, 2
      %s1274 = smul.u32 %s1273, 8
      %s1275 = sadd.s32 %s1274, %s1272
      %s1276 = scalar_lea.vmem [#allocation10], %s1275
      %1277 = vst.msk [vmem:[%s1276] ss:$8 sm:$0x3] %vm1268, %v1263
      %1278 = vst.msk [vmem:[%s1276] ss:$8 sm:$0x0] %vm1268, %v1263
    $region30: #{tpu_custom_call.1} parent=1 // loop_footer
      %s72 = sadd.s32 1, %s68
    $region31: #{tpu_custom_call.1} parent=1 // loop_footer_branch
      %67 = sbr.rel target = $region27
    $region32: #{tpu_custom_call.1} parent=1 // loop_exit
      _
    // Predicated region
    $region33: #{tpu_custom_call.1} parent=1 // pred_check
      _
    $region34: #{tpu_custom_call.1} parent=1 // pred_check_branch
      %1280 = sbr.rel (0) target = $region36
    $region35: #{tpu_custom_call.1} parent=1 // pred_region
      %s1282 = ssub.s32 256, 256
      %1283 = vsyncadd [#allocation6], %s1282
      %s1285 = sshll.u32 [#allocation10], 4
      %s1286 = int_to_ptr.vmem [resolvable:$true] %s1285
      %1288 = dma.vmem_to_hbm [thread:$0]  %s1286, 256, %s4, [#allocation6]
    $region36: #{tpu_custom_call.1} parent=1 // pred_fallthru
      _
    // Predicated region
    $region37: #{tpu_custom_call.1} parent=1 // pred_check
      _
    $region38: #{tpu_custom_call.1} parent=1 // pred_check_branch
      %1290 = sbr.rel (0) target = $region40
    $region39: #{tpu_custom_call.1} parent=1 // pred_region
      %1291 = dma.done [#allocation6], 256
    $region40: #{tpu_custom_call.1} parent=1 // pred_fallthru
      _
    %1292 = vsyncpa [#allocation5], 1
    %1293 = vsyncpa [#allocation8], 1
    %1294 = vsyncpa [#allocation6], 1

</llo_original>
